<compile_context>
chip_gen: v6e
topology: v6e:2x2x1
jax: 0.10.0
libtpu: 0.0.40
codegen_flags: <defaults>
</compile_context>

<pallas_src>
import functools
import math

import jax
import jax.numpy as jnp
from jax import lax
from jax.experimental import pallas as pl
from jax.experimental.pallas import tpu as pltpu

LANES = 128
SUBLANES = 8
ALIGN = SUBLANES * LANES          # 1024 flat elements per (8, 128) slab
MAX_TILE_ROWS = 8192              # 8192 x 128 x 4 B = 4 MiB per f32 input tile
CHUNK_ROWS = 512                  # in-kernel compute chunk (256 KiB f32 temps)
NUM_CORES = 2                     # leading 'parallel' axis (v7x megacore)
VMEM_LIMIT_BYTES = 48 * 1024 * 1024


def _pv_loss_kernel(o_ref, t_ref, acc_ref, *, steps, tile_rows, chunk_rows,
                    n_rows, blocks, needs_mask):
    """Accumulate smooth-L1 proxy-voting terms of one (tile_rows, 128) tile.

    Lanes hold interleaved (x, y) pairs; only ODD lanes carry a complete pair.
    Even-lane garbage stays confined to even lanes through the per-chunk
    (R,128)->(R/8,8,128)->sum(0) fold and is discarded by the wrapper.
    acc_ref is the resident (8, 128) output block (accumulator) of this
    'parallel' slice; it persists across the 'arbitrary' step axis.
    """
    p = pl.program_id(0)
    s = pl.program_id(1)
    blk = p * steps + s

    @pl.when(s == 0)
    def _init():
        acc_ref[...] = jnp.zeros_like(acc_ref)

    def fold(r0, rows_c, masked):
        o = o_ref[pl.ds(r0, rows_c), :].astype(jnp.float32)
        t = t_ref[pl.ds(r0, rows_c), :].astype(jnp.float32)
        # roll(+1) brings lane i-1 to lane i, so at ODD lanes (which hold y_k):
        #   o = y_k, o_dn = x_k, t = ty_k, t_dn = tx_k
        o_dn = pltpu.roll(o, shift=1, axis=1)            # XLU
        t_dn = pltpu.roll(t, shift=1, axis=1)            # XLU
        o2 = o * o
        cross = o * t_dn - o_dn * t                      # odd lanes: y*tx - x*ty
        nsq = o2 + pltpu.roll(o2, shift=1, axis=1)       # odd lanes: x^2 + y^2
        # |cross| / clamp_min(||v||, 1e-6) == |cross| * rsqrt(max(nsq, 1e-12))
        loss = jnp.abs(cross) * lax.rsqrt(jnp.maximum(nsq, 1e-12))   # EUP
        # smooth_l1(loss, 0), beta = 1; loss >= 0 always.
        sm = jnp.where(loss < 1.0, 0.5 * loss * loss, loss - 0.5)
        if masked:
            # Only the partial boundary block reaches here (gated by pl.when).
            row = lax.broadcasted_iota(jnp.int32, sm.shape, 0)
            sm = jnp.where(blk * tile_rows + r0 + row < n_rows, sm, 0.0)
        # (rows_c, 128) -> (8, 128): pure vreg adds, lane positions preserved.
        return sm.reshape(rows_c // SUBLANES, SUBLANES, LANES).sum(axis=0)

    def accumulate(masked):
        n_full = tile_rows // chunk_rows
        rem = tile_rows % chunk_rows                    # multiple of 8

        def body(c, acc):
            r0 = pl.multiple_of(c * chunk_rows, chunk_rows)
            return acc + fold(r0, chunk_rows, masked)

        acc = jnp.zeros((SUBLANES, LANES), jnp.float32)
        if n_full > 0:
            acc = lax.fori_loop(0, n_full, body, acc)
        if rem:
            acc = acc + fold(n_full * chunk_rows, rem, masked)
        acc_ref[...] += acc

    if needs_mask:
        @pl.when(blk == blocks - 1)
        def _last_partial():
            accumulate(masked=True)

        @pl.when(blk != blocks - 1)
        def _full():
            accumulate(masked=False)
    else:
        accumulate(masked=False)


def _smooth_l1_terms(o_pairs, t_pairs):
    """Per-pair smooth-L1(|y*tx - x*ty| / max(||v||, 1e-6), 0) in plain JAX."""
    o = o_pairs.astype(jnp.float32)
    t = t_pairs.astype(jnp.float32)
    nrm = jnp.maximum(jnp.sqrt(jnp.sum(o * o, axis=-1)), 1e-6)
    cross = o[..., 1] * t[..., 0] - o[..., 0] * t[..., 1]
    l = jnp.abs(cross) / nrm
    return jnp.where(l < 1.0, 0.5 * l * l, l - 0.5)


@functools.partial(jax.jit, static_argnames=("reduction",))
def proxy_voting_loss(out, target, reduction="sum"):
    """JAX/Pallas equivalent of ProxyVotingLoss.forward.

    out, target: (B, H, W, K, 2) arrays (vector field, last dim = (x, y)).
    reduction: 'sum' or 'mean'.
    """
    if reduction not in ("sum", "mean"):
        raise ValueError(f"unsupported reduction: {reduction}")
    assert out.shape == target.shape and out.shape[-1] == 2
    n_pairs = math.prod(out.shape[:-1])
    n_flat = 2 * n_pairs

    # Row-major flatten keeps each (x, y) pair adjacent -> interleaved lanes.
    o_flat = out.reshape(-1)
    t_flat = target.reshape(-1)

    n_main = (n_flat // ALIGN) * ALIGN          # 1024-aligned prefix (static)
    total = jnp.float32(0.0)

    if n_main < n_flat:
        # <=1023-element tail: a handful of plain-JAX ops instead of a full
        # jnp.pad read+write pass over both tensors.
        total = total + jnp.sum(
            _smooth_l1_terms(o_flat[n_main:].reshape(-1, 2),
                             t_flat[n_main:].reshape(-1, 2)))

    if n_main > 0:
        o2d = (o_flat if n_main == n_flat else o_flat[:n_main]).reshape(-1, LANES)
        t2d = (t_flat if n_main == n_flat else t_flat[:n_main]).reshape(-1, LANES)
        rows = n_main // LANES                  # always a multiple of 8

        tile_rows = min(MAX_TILE_ROWS, rows)
        blocks = pl.cdiv(rows, tile_rows)
        # No clamped/duplicate blocks: only split the 'parallel' axis when it
        # divides evenly (single-TC v5e/v6e lose nothing; v7x gets a clean
        # 2-way shard whenever blocks is even).
        n_par = NUM_CORES if blocks % NUM_CORES == 0 else 1
        steps = blocks // n_par
        chunk_rows = min(CHUNK_ROWS, tile_rows)
        needs_mask = blocks * tile_rows != rows  # last block partial?

        kernel = functools.partial(
            _pv_loss_kernel, steps=steps, tile_rows=tile_rows,
            chunk_rows=chunk_rows, n_rows=rows, blocks=blocks,
            needs_mask=needs_mask)

        in_spec = pl.BlockSpec((tile_rows, LANES),
                               lambda p, s: (p * steps + s, 0))

        # TODO(synk): on v7x, verify in the Mosaic dump that the leading
        # 'parallel' axis is actually sharded across both TensorCores; if not,
        # switch it to pltpu.CORE_PARALLEL / pl.core_map over a TC mesh.
        partials = pl.pallas_call(
            kernel,
            out_shape=jax.ShapeDtypeStruct((n_par * SUBLANES, LANES),
                                           jnp.float32),
            grid_spec=pltpu.PrefetchScalarGridSpec(
                num_scalar_prefetch=0,
                grid=(n_par, steps),
                in_specs=[in_spec, in_spec],
                out_specs=pl.BlockSpec((SUBLANES, LANES), lambda p, s: (p, 0)),
            ),
            compiler_params=pltpu.CompilerParams(
                dimension_semantics=("parallel", "arbitrary"),
                vmem_limit_bytes=VMEM_LIMIT_BYTES),
        )(o2d, t2d)

        # Only odd lanes hold losses of complete (x, y) pairs.
        total = total + jnp.sum(partials[:, 1::2])

    if reduction == "mean":
        return total / jnp.float32(n_pairs)
    return total


def _reference(out, target, reduction="sum"):
    """Pure-JAX reference matching the PyTorch module."""
    out = out.astype(jnp.float32)
    target = target.astype(jnp.float32)
    norm = jnp.maximum(jnp.linalg.norm(out, axis=-1), 1e-6)
    lp = out[..., 1] * target[..., 0] - out[..., 0] * target[..., 1]
    loss = jnp.abs(lp) / norm
    sm = jnp.where(loss < 1.0, 0.5 * loss * loss, loss - 0.5)
    return jnp.sum(sm) if reduction == "sum" else jnp.mean(sm)


if __name__ == "__main__":
    key = jax.random.PRNGKey(0)
    k1, k2, k3, k4, k5, k6 = jax.random.split(key, 6)

    # Small test: single block, single in-kernel chunk, no masking, no tail.
    B, H, W, K = 2, 16, 16, 4
    out = jax.random.normal(k1, (B, H, W, K, 2), dtype=jnp.float32)
    target = jax.random.normal(k2, (B, H, W, K, 2), dtype=jnp.float32)
    res_sum = jax.block_until_ready(proxy_voting_loss(out, target, "sum"))
    res_mean = jax.block_until_ready(proxy_voting_loss(out, target, "mean"))
    ref_sum = _reference(out, target, "sum")
    ref_mean = _reference(out, target, "mean")
    assert jnp.allclose(res_sum, ref_sum, rtol=1e-4, atol=1e-3), (res_sum, ref_sum)
    assert jnp.allclose(res_mean, ref_mean, rtol=1e-4, atol=1e-6), (res_mean, ref_mean)

    # Full-tile test: rows == 8192 -> one block, 16 inner chunks, no masking.
    out2 = jax.random.normal(k3, (2, 64, 64, 64, 2), dtype=jnp.float32)
    target2 = jax.random.normal(k4, (2, 64, 64, 64, 2), dtype=jnp.float32)
    res2 = jax.block_until_ready(proxy_voting_loss(out2, target2, "mean"))
    ref2 = _reference(out2, target2, "mean")
    assert jnp.allclose(res2, ref2, rtol=1e-4, atol=1e-6), (res2, ref2)

    # Ragged test: rows = 8640 -> 2 blocks (2-way 'parallel' split), gated row
    # mask on the partial last block, plus an 84-element plain-JAX tail.
    out3 = jax.random.normal(k5, (2, 37, 53, 141, 2), dtype=jnp.float32)
    target3 = jax.random.normal(k6, (2, 37, 53, 141, 2), dtype=jnp.float32)
    res3 = jax.block_until_ready(proxy_voting_loss(out3, target3, "sum"))
    ref3 = _reference(out3, target3, "sum")
    assert jnp.allclose(res3, ref3, rtol=1e-4, atol=1e-2), (res3, ref3)

    print("KERNEL_OK")
</pallas_src>

<mosaic_0001>
module attributes {stable_mosaic.version = 11 : i64} {
  func.func @_pv_loss_kernel(%arg0: i32, %arg1: i32, %arg2: memref<32x128xf32, #tpu.memory_space<vmem>>, %arg3: memref<32x128xf32, #tpu.memory_space<vmem>>, %arg4: memref<8x128xf32, #tpu.memory_space<vmem>>) attributes {dimension_semantics = [#tpu.dimension_semantics<parallel>, #tpu.dimension_semantics<arbitrary>], iteration_bounds = array<i64: 1, 1>, scalar_prefetch = 0 : i64, scratch_operands = 0 : i64, tpu.core_type = #tpu.core_type<tc>, window_params = [{transform_indices = @transform_0, window_bounds = array<i64: 32, 128>}, {transform_indices = @transform_1, window_bounds = array<i64: 32, 128>}, {transform_indices = @transform_2, window_bounds = array<i64: 8, 128>}]} {
    %c0_i32 = arith.constant 0 : i32
    %0 = arith.cmpi eq, %arg1, %c0_i32 : i32
    %1 = arith.extui %0 : i1 to i32
    %c0_i32_0 = arith.constant 0 : i32
    %2 = arith.cmpi ne, %1, %c0_i32_0 : i32
    scf.if %2 {
      %cst_15 = arith.constant 0.000000e+00 : f32
      %37 = vector.broadcast %cst_15 : f32 to vector<8x128xf32>
      %c0_16 = arith.constant 0 : index
      %c0_17 = arith.constant 0 : index
      %38 = vector.load %arg4[%c0_16, %c0_17] : memref<8x128xf32, #tpu.memory_space<vmem>>, vector<8x128xf32>
      tpu.vector_store %arg4[%c0_16, %c0_17], %37 {strides = array<i32>} : memref<8x128xf32, #tpu.memory_space<vmem>>, vector<8x128xf32>,
    } else {
    }
    %cst = arith.constant 0.000000e+00 : f32
    %3 = vector.broadcast %cst : f32 to vector<8x128xf32>
    %c0_i32_1 = arith.constant 0 : i32
    %c32_i32 = arith.constant 32 : i32
    %4 = arith.muli %c0_i32_1, %c32_i32 : i32
    %5 = tpu.assume_multiple %4, 32 : i32
    %6 = arith.index_cast %5 : i32 to index
    %c0 = arith.constant 0 : index
    %7 = vector.load %arg2[%6, %c0] : memref<32x128xf32, #tpu.memory_space<vmem>>, vector<32x128xf32>
    %8 = arith.index_cast %5 : i32 to index
    %c0_2 = arith.constant 0 : index
    %9 = vector.load %arg3[%8, %c0_2] : memref<32x128xf32, #tpu.memory_space<vmem>>, vector<32x128xf32>
    %c1_i32 = arith.constant 1 : i32
    %10 = tpu.dynamic_rotate %7 by %c1_i32 dim 1 : vector<32x128xf32>, i32 -> vector<32x128xf32>
    %c1_i32_3 = arith.constant 1 : i32
    %11 = tpu.dynamic_rotate %9 by %c1_i32_3 dim 1 : vector<32x128xf32>, i32 -> vector<32x128xf32>
    %12 = arith.mulf %7, %7 : vector<32x128xf32>
    %13 = arith.mulf %7, %11 : vector<32x128xf32>
    %14 = arith.mulf %10, %9 : vector<32x128xf32>
    %15 = arith.subf %13, %14 : vector<32x128xf32>
    %c1_i32_4 = arith.constant 1 : i32
    %16 = tpu.dynamic_rotate %12 by %c1_i32_4 dim 1 : vector<32x128xf32>, i32 -> vector<32x128xf32>
    %17 = arith.addf %12, %16 : vector<32x128xf32>
    %18 = math.absf %15 : vector<32x128xf32>
    %cst_5 = arith.constant 9.99999996E-13 : f32
    %19 = vector.broadcast %cst_5 : f32 to vector<32x128xf32>
    %20 = arith.maximumf %17, %19 : vector<32x128xf32>
    %21 = math.rsqrt %20 : vector<32x128xf32>
    %22 = arith.mulf %18, %21 : vector<32x128xf32>
    %cst_6 = arith.constant 1.000000e+00 : f32
    %23 = vector.broadcast %cst_6 : f32 to vector<32x128xf32>
    %24 = arith.cmpf olt, %22, %23 : vector<32x128xf32>
    %cst_7 = arith.constant 5.000000e-01 : f32
    %25 = vector.broadcast %cst_7 : f32 to vector<32x128xf32>
    %26 = arith.mulf %25, %22 : vector<32x128xf32>
    %27 = arith.mulf %26, %22 : vector<32x128xf32>
    %cst_8 = arith.constant 5.000000e-01 : f32
    %28 = vector.broadcast %cst_8 : f32 to vector<32x128xf32>
    %29 = arith.subf %22, %28 : vector<32x128xf32>
    %30 = arith.select %24, %27, %29 : vector<32x128xi1>, vector<32x128xf32>
    %31 = vector.shape_cast %30 : vector<32x128xf32> to vector<4x8x128xf32>
    %cst_9 = arith.constant dense<0.000000e+00> : vector<8x128xf32>
    %32 = vector.multi_reduction <add>, %31, %cst_9 [0] : vector<4x8x128xf32> to vector<8x128xf32>
    %33 = arith.addf %3, %32 : vector<8x128xf32>
    %c1_i32_10 = arith.constant 1 : i32
    %c0_11 = arith.constant 0 : index
    %c0_12 = arith.constant 0 : index
    %34 = vector.load %arg4[%c0_11, %c0_12] : memref<8x128xf32, #tpu.memory_space<vmem>>, vector<8x128xf32>
    %35 = arith.addf %34, %33 : vector<8x128xf32>
    %c0_13 = arith.constant 0 : index
    %c0_14 = arith.constant 0 : index
    %36 = vector.load %arg4[%c0_13, %c0_14] : memref<8x128xf32, #tpu.memory_space<vmem>>, vector<8x128xf32>
    tpu.vector_store %arg4[%c0_13, %c0_14], %35 {strides = array<i32>} : memref<8x128xf32, #tpu.memory_space<vmem>>, vector<8x128xf32>,
    return
  }
  func.func @transform_0(%arg0: i32, %arg1: i32) -> (i32, i32) {
    %c1_i32 = arith.constant 1 : i32
    %0 = arith.muli %arg0, %c1_i32 : i32
    %1 = arith.addi %0, %arg1 : i32
    %c0_i32 = arith.constant 0 : i32
    %c0_i32_0 = arith.constant 0 : i32
    return %1, %c0_i32 : i32, i32
  }
  func.func @transform_1(%arg0: i32, %arg1: i32) -> (i32, i32) {
    %c1_i32 = arith.constant 1 : i32
    %0 = arith.muli %arg0, %c1_i32 : i32
    %1 = arith.addi %0, %arg1 : i32
    %c0_i32 = arith.constant 0 : i32
    %c0_i32_0 = arith.constant 0 : i32
    return %1, %c0_i32 : i32, i32
  }
  func.func @transform_2(%arg0: i32, %arg1: i32) -> (i32, i32) {
    %c0_i32 = arith.constant 0 : i32
    %c0_i32_0 = arith.constant 0 : i32
    return %arg0, %c0_i32 : i32, i32
  }
}

</mosaic_0001>

<llo_original>
// kernel: proxy_voting_loss.1
$region0: #{proxy_voting_loss.1}
  #allocation0 [shape = 'u32[]', space=smem, size = 0x4, offset = 0x4, fixed_abs, tag = 'smem constant byte address 0x4 - core index']
  #allocation1 [shape = 'u32[144,128]{1,0:T(1,128)}', space=vmem, size = 0x12000, scoped, tag = 'internal scratch']
  %s0 = inlined_call_operand.vmem [shape: f32[32,128], index: 0, kind: input, shape index: {}]
  %s1 = inlined_call_operand.vmem [shape: f32[32,128], index: 1, kind: input, shape index: {}]
  %s2 = inlined_call_operand.vmem [shape: f32[8,128], index: 2, kind: output, shape index: {}]
  %s3 = sld [smem:[#allocation0]]
  $region22: #{proxy_voting_loss.1} parent=0
    _
  %s5 = ssub.s32 1, %s3
  %s6 = scalar_select 0, %s5, %s3
  // Predicated region
  $region2: #{proxy_voting_loss.1} parent=0 // pred_check
    _
  $region3: #{proxy_voting_loss.1} parent=0 // pred_check_branch
    %8 = sbr.rel (0) target = $region5
  $region4: #{proxy_voting_loss.1} parent=0 // pred_region
    %s9 = sadd.s32 0, 0
    %s10 = smul.u32 4, %s9
    %p11 = scmp.lt.s32.totalorder %s10, 3
    %s12 = scalar_select %p11, %s10, 3
    %s13 = smul.addr %s12, 8
    %s14 = scalar_lea.vmem %s0, %s13
    %s15 = sadd.s32 0, 0
    %s16 = smul.u32 4, %s15
  $region5: #{proxy_voting_loss.1} parent=0 // pred_fallthru
    _
  // Predicated region
  $region6: #{proxy_voting_loss.1} parent=0 // pred_check
    _
  $region7: #{proxy_voting_loss.1} parent=0 // pred_check_branch
    %18 = sbr.rel (0) target = $region9
  $region8: #{proxy_voting_loss.1} parent=0 // pred_region
    %s19 = sadd.s32 0, 0
    %s20 = smul.u32 4, %s19
    %p21 = scmp.lt.s32.totalorder %s20, 3
    %s22 = scalar_select %p21, %s20, 3
    %s23 = smul.addr %s22, 8
    %s24 = scalar_lea.vmem %s1, %s23
    %s25 = sadd.s32 0, 0
    %s26 = smul.u32 4, %s25
  $region9: #{proxy_voting_loss.1} parent=0 // pred_fallthru
    _
  %s27 = sadd.s32 0, 0
  %s28 = smul.u32 4, %s27
  %p29 = scmp.lt.s32.totalorder %s28, 3
  %s30 = scalar_select %p29, %s28, 3
  %s31 = smul.addr %s30, 8
  %s32 = scalar_lea.vmem %s0, %s31
  %s33 = sadd.s32 0, 0
  %s34 = smul.u32 4, %s33
  %p35 = scmp.lt.s32.totalorder %s34, 3
  %s36 = scalar_select %p35, %s34, 3
  %s37 = smul.addr %s36, 8
  %s38 = scalar_lea.vmem %s1, %s37
  %s39 = sadd.s32 0, 0
  %s40 = smul.u32 4, %s39
  %p41 = scmp.lt.s32.totalorder %s40, 3
  %s42 = scalar_select %p41, %s40, 3
  %s43 = smul.addr %s42, 8
  %s44 = scalar_lea.vmem %s0, %s43
  %s45 = sadd.s32 0, 0
  %s46 = smul.u32 4, %s45
  %s47 = sadd.s32 0, 0
  %s48 = smul.u32 4, %s47
  %p49 = scmp.lt.s32.totalorder %s48, 3
  %s50 = scalar_select %p49, %s48, 3
  %s51 = smul.addr %s50, 8
  %s52 = scalar_lea.vmem %s1, %s51
  %s53 = sadd.s32 0, 0
  %s54 = smul.u32 4, %s53
  %p55 = scmp.eq.s32.totalorder 0, 0
  // Predicated region
  $region10: #{proxy_voting_loss.1} parent=0 // pred_check
    %p56 = pneg %p55
  $region11: #{proxy_voting_loss.1} parent=0 // pred_check_branch
    %58 = sbr.rel (%p56) target = $region13
  $region12: #{proxy_voting_loss.1} parent=0 // pred_region
    %59 = vst [vmem:[%s2] sm:$0xff] 0.0
  $region13: #{proxy_voting_loss.1} parent=0 // pred_fallthru
    _
  %v60 = vld [vmem:[%s44] sm:$0xff]
  %v61 = vld [vmem:[%s44 + $0x8] sm:$0xff]
  %v62 = vld [vmem:[%s44 + $0x10] sm:$0xff]
  %v63 = vld [vmem:[%s44 + $0x18] sm:$0xff]
  %v64 = vld [vmem:[%s52] sm:$0xff]
  %v65 = vld [vmem:[%s52 + $0x8] sm:$0xff]
  %v66 = vld [vmem:[%s52 + $0x10] sm:$0xff]
  %v67 = vld [vmem:[%s52 + $0x18] sm:$0xff]
  %68 = vrot.lane.b32.xlu0 %v60, 1
  %v69 = vpop.permute.xlu0 %68
  %70 = vrot.lane.b32.xlu0 %v61, 1
  %v71 = vpop.permute.xlu0 %70
  %72 = vrot.lane.b32.xlu0 %v62, 1
  %v73 = vpop.permute.xlu0 %72
  %74 = vrot.lane.b32.xlu0 %v63, 1
  %v75 = vpop.permute.xlu0 %74
  %76 = vrot.lane.b32.xlu0 %v64, 1
  %v77 = vpop.permute.xlu0 %76
  %78 = vrot.lane.b32.xlu0 %v65, 1
  %v79 = vpop.permute.xlu0 %78
  %80 = vrot.lane.b32.xlu0 %v66, 1
  %v81 = vpop.permute.xlu0 %80
  %82 = vrot.lane.b32.xlu0 %v67, 1
  %v83 = vpop.permute.xlu0 %82
  %v84 = vmul.f32 %v60, %v60
  %v85 = vmul.f32 %v61, %v61
  %v86 = vmul.f32 %v62, %v62
  %v87 = vmul.f32 %v63, %v63
  %v88 = vmul.f32 %v60, %v77
  %v89 = vmul.f32 %v61, %v79
  %v90 = vmul.f32 %v62, %v81
  %v91 = vmul.f32 %v63, %v83
  %v92 = vmul.f32 %v69, %v64
  %v93 = vmul.f32 %v71, %v65
  %v94 = vmul.f32 %v73, %v66
  %v95 = vmul.f32 %v75, %v67
  %v96 = vsub.f32 %v88, %v92
  %v97 = vsub.f32 %v89, %v93
  %v98 = vsub.f32 %v90, %v94
  %v99 = vsub.f32 %v91, %v95
  %100 = vrot.lane.b32.xlu0 %v84, 1
  %v101 = vpop.permute.xlu0 %100
  %102 = vrot.lane.b32.xlu0 %v85, 1
  %v103 = vpop.permute.xlu0 %102
  %104 = vrot.lane.b32.xlu0 %v86, 1
  %v105 = vpop.permute.xlu0 %104
  %106 = vrot.lane.b32.xlu0 %v87, 1
  %v107 = vpop.permute.xlu0 %106
  %v108 = vadd.f32 %v84, %v101
  %v109 = vadd.f32 %v85, %v103
  %v110 = vadd.f32 %v86, %v105
  %v111 = vadd.f32 %v87, %v107
  %v112 = vand.u32 2147483647, %v96
  %v113 = vand.u32 2147483647, %v97
  %v114 = vand.u32 2147483647, %v98
  %v115 = vand.u32 2147483647, %v99
  %v116 = vmax.f32 %v108, 1e-12
  %v117 = vmax.f32 %v109, 1e-12
  %v118 = vmax.f32 %v110, 1e-12
  %v119 = vmax.f32 %v111, 1e-12
  %v120 = vrsqrt.pop %v116
  %v121 = vrsqrt.pop %v117
  %v122 = vrsqrt.pop %v118
  %v123 = vrsqrt.pop %v119
  %v124 = vmul.f32 %v112, %v120
  %v125 = vmul.f32 %v113, %v121
  %v126 = vmul.f32 %v114, %v122
  %v127 = vmul.f32 %v115, %v123
  %vm128 = vcmp.lt.f32.partialorder %v124, 1.0
  %vm129 = vcmp.lt.f32.partialorder %v125, 1.0
  %vm130 = vcmp.lt.f32.partialorder %v126, 1.0
  %vm131 = vcmp.lt.f32.partialorder %v127, 1.0
  %v132 = vmul.f32 %v124, 0.5
  %v133 = vmul.f32 %v125, 0.5
  %v134 = vmul.f32 %v126, 0.5
  %v135 = vmul.f32 %v127, 0.5
  %v136 = vmul.f32 %v132, %v124
  %v137 = vmul.f32 %v133, %v125
  %v138 = vmul.f32 %v134, %v126
  %v139 = vmul.f32 %v135, %v127
  %v140 = vsub.f32 %v124, 0.5
  %v141 = vsub.f32 %v125, 0.5
  %v142 = vsub.f32 %v126, 0.5
  %v143 = vsub.f32 %v127, 0.5
  %v144 = vsel %vm128, %v136, %v140
  %v145 = vsel %vm129, %v137, %v141
  %v146 = vsel %vm130, %v138, %v142
  %v147 = vsel %vm131, %v139, %v143
  %v148 = vadd.f32 %v144, %v145
  %v149 = vadd.f32 %v148, %v146
  %v150 = vadd.f32 %v149, %v147
  %v151 = vadd.f32 %v150, 0.0
  %v152 = vld [vmem:[%s2] sm:$0xff]
  %v153 = vadd.f32 %v152, %v151
  %154 = vst [vmem:[%s2] sm:$0xff] %v153
  // Predicated region
  $region14: #{proxy_voting_loss.1} parent=0 // pred_check
    _
  $region15: #{proxy_voting_loss.1} parent=0 // pred_check_branch
    %156 = sbr.rel (0) target = $region17
  $region16: #{proxy_voting_loss.1} parent=0 // pred_region
    _
  $region17: #{proxy_voting_loss.1} parent=0 // pred_fallthru
    _
  // Predicated region
  $region18: #{proxy_voting_loss.1} parent=0 // pred_check
    _
  $region19: #{proxy_voting_loss.1} parent=0 // pred_check_branch
    %158 = sbr.rel (0) target = $region21
  $region20: #{proxy_voting_loss.1} parent=0 // pred_region
    _
  $region21: #{proxy_voting_loss.1} parent=0 // pred_fallthru
    _

</llo_original>
